<compile_context>
chip_gen: v5e
topology: v5e:2x2
jax: 0.10.0
libtpu: 0.0.40
codegen_flags: <defaults>
</compile_context>

<pallas_src>
import functools

import jax
import jax.numpy as jnp
from jax import lax
from jax.experimental import pallas as pl
from jax.experimental.pallas import tpu as pltpu


def _interp_comp_kernel(z2_ref, act_ref, w_ref, b_ref, out_ref, *, latent_size):
    L = latent_size
    z2 = z2_ref[...]                     # (TB, 2L)  row b = [z_ref_b | z_trans_b]
    act = act_ref[...]                   # (TB, A)
    w = w_ref[...]                       # (L, 2L+A) nn.Linear (out, in) layout

    # Fused Linear(cat([z_ref, z_trans, actions])) without transposed copies:
    #   logits = [z2 | act] @ W.T  ==  z2 @ W[:, :2L].T + act @ W[:, 2L:].T
    nt = (((1,), (1,)), ((), ()))        # contract lhs dim1 with rhs dim1 (x @ W.T)
    logits = lax.dot_general(z2, w[:, :2 * L], nt,
                             preferred_element_type=jnp.float32)
    logits = logits + lax.dot_general(act, w[:, 2 * L:], nt,
                                      preferred_element_type=jnp.float32)
    logits = logits + b_ref[...].astype(jnp.float32)   # (1, L) broadcasts over rows

    gate = jax.nn.sigmoid(logits)                      # f32 (EUP)
    zr = z2[:, :L].astype(jnp.float32)
    zt = z2[:, L:].astype(jnp.float32)
    # zr*gate + zt*(1-gate)  ==  zt + gate*(zr - zt)
    out_ref[...] = (zt + gate * (zr - zt)).astype(out_ref.dtype)


def interp_comp(z, actions, weight, bias, latent_size, n_actions, *,
                block_rows=512):
    """z: (2B, latent), actions: (B, n_actions),
    weight: (latent, 2*latent + n_actions)  [PyTorch nn.Linear (out, in) layout],
    bias: (latent,).  Returns (B, latent)."""
    L, A = latent_size, n_actions
    B = actions.shape[0]

    # Pure-metadata reshapes only (no HBM copies in the wrapper):
    z2 = z.reshape(B, 2 * L)        # contiguous: row b = [z_ref_b | z_trans_b]
    b2 = bias.reshape(1, L)

    # Batch tile: full batch if it fits one tile, otherwise a multiple of 8 rows.
    tb = B if B <= block_rows else max(8, (block_rows // 8) * 8)
    grid = (pl.cdiv(B, tb),)

    kernel = functools.partial(_interp_comp_kernel, latent_size=L)

    # TODO(synk): with L=32 the output fills only 32 of 128 lanes; a lane-dense
    # layout needs several InterpComp heads/timesteps packed into the last dim,
    # which would change the module interface, so it is not done here.
    return pl.pallas_call(
        kernel,
        out_shape=jax.ShapeDtypeStruct((B, L), z.dtype),
        grid=grid,
        in_specs=[
            pl.BlockSpec((tb, 2 * L), lambda i: (i, 0)),        # z tile
            pl.BlockSpec((tb, A), lambda i: (i, 0)),            # actions tile
            pl.BlockSpec((L, 2 * L + A), lambda i: (0, 0)),     # weight (VMEM-resident)
            pl.BlockSpec((1, L), lambda i: (0, 0)),             # bias   (VMEM-resident)
        ],
        out_specs=pl.BlockSpec((tb, L), lambda i: (i, 0)),
        compiler_params=pltpu.CompilerParams(
            dimension_semantics=("parallel",)),
    )(z2, actions, weight, b2)


def interp_comp_reference(z, actions, weight, bias, latent_size):
    L = latent_size
    z3 = z.reshape(-1, 2, L)
    z_ref, z_trans = z3[:, 0, :], z3[:, 1, :]
    x = jnp.concatenate([z_ref, z_trans, actions], axis=1)
    w = jax.nn.sigmoid(x @ weight.T + bias)
    return z_ref * w + z_trans * (1.0 - w)


if __name__ == "__main__":
    latent_size = 32
    n_actions = 8
    batch = 8  # B -> z has 2B rows

    key = jax.random.PRNGKey(0)
    k_z, k_a, k_w, k_b = jax.random.split(key, 4)

    z = jax.random.normal(k_z, (2 * batch, latent_size), dtype=jnp.float32)
    actions = jax.random.normal(k_a, (batch, n_actions), dtype=jnp.float32)

    # Deterministic nn.Linear-style params: weight (out, in), bias (out,)
    fan_in = 2 * latent_size + n_actions
    bound = 1.0 / (fan_in ** 0.5)
    weight = jax.random.uniform(k_w, (latent_size, fan_in),
                                minval=-bound, maxval=bound, dtype=jnp.float32)
    bias = jax.random.uniform(k_b, (latent_size,),
                              minval=-bound, maxval=bound, dtype=jnp.float32)

    out = interp_comp(z, actions, weight, bias, latent_size, n_actions)
    out = jax.block_until_ready(out)

    ref = interp_comp_reference(z, actions, weight, bias, latent_size)
    assert out.shape == (batch, latent_size)
    assert jnp.allclose(out, ref, atol=1e-5, rtol=1e-5), "mismatch vs reference"

    print("KERNEL_OK")
</pallas_src>

<mosaic_0001>
module attributes {stable_mosaic.version = 11 : i64} {
  func.func @_interp_comp_kernel(%arg0: i32, %arg1: memref<8x64xf32, #tpu.memory_space<vmem>>, %arg2: memref<8x8xf32, #tpu.memory_space<vmem>>, %arg3: memref<32x72xf32, #tpu.memory_space<vmem>>, %arg4: memref<1x32xf32, #tpu.memory_space<vmem>>, %arg5: memref<8x32xf32, #tpu.memory_space<vmem>>) attributes {dimension_semantics = [#tpu.dimension_semantics<parallel>], iteration_bounds = array<i64: 1>, scalar_prefetch = 0 : i64, scratch_operands = 0 : i64, tpu.core_type = #tpu.core_type<tc>, window_params = [{transform_indices = @transform_0, window_bounds = array<i64: 8, 64>}, {transform_indices = @transform_1, window_bounds = array<i64: 8, 8>}, {pipeline_mode = #tpu.pipeline_mode<synchronous>, transform_indices = @transform_2, window_bounds = array<i64: 32, 72>}, {pipeline_mode = #tpu.pipeline_mode<synchronous>, transform_indices = @transform_3, window_bounds = array<i64: 1, 32>}, {transform_indices = @transform_4, window_bounds = array<i64: 8, 32>}]} {
    %c0 = arith.constant 0 : index
    %c0_0 = arith.constant 0 : index
    %0 = vector.load %arg1[%c0, %c0_0] : memref<8x64xf32, #tpu.memory_space<vmem>>, vector<8x64xf32>
    %c0_1 = arith.constant 0 : index
    %c0_2 = arith.constant 0 : index
    %1 = vector.load %arg2[%c0_1, %c0_2] : memref<8x8xf32, #tpu.memory_space<vmem>>, vector<8x8xf32>
    %c0_3 = arith.constant 0 : index
    %c0_4 = arith.constant 0 : index
    %2 = vector.load %arg3[%c0_3, %c0_4] : memref<32x72xf32, #tpu.memory_space<vmem>>, vector<32x72xf32>
    %3 = vector.extract_strided_slice %2 {offsets = [0, 0], sizes = [32, 64], strides = [1, 1]} : vector<32x72xf32> to vector<32x64xf32>
    %cst = arith.constant dense<0.000000e+00> : vector<8x32xf32>
    %4 = tpu.matmul %0, %3, %cst {dimension_numbers = #tpu.dot_dimension_numbers<[1], [1], [0], [0], [0, 0, 1, 0], [], []>} : vector<8x64xf32>, vector<32x64xf32>, vector<8x32xf32> -> vector<8x32xf32>
    %5 = vector.extract_strided_slice %2 {offsets = [0, 64], sizes = [32, 8], strides = [1, 1]} : vector<32x72xf32> to vector<32x8xf32>
    %cst_5 = arith.constant dense<0.000000e+00> : vector<8x32xf32>
    %6 = tpu.matmul %1, %5, %cst_5 {dimension_numbers = #tpu.dot_dimension_numbers<[1], [1], [0], [0], [0, 0, 1, 0], [], []>} : vector<8x8xf32>, vector<32x8xf32>, vector<8x32xf32> -> vector<8x32xf32>
    %7 = arith.addf %4, %6 : vector<8x32xf32>
    %c0_6 = arith.constant 0 : index
    %c0_7 = arith.constant 0 : index
    %8 = vector.load %arg4[%c0_6, %c0_7] : memref<1x32xf32, #tpu.memory_space<vmem>>, vector<1x32xf32>
    %9 = vector.broadcast %8 : vector<1x32xf32> to vector<8x32xf32>
    %10 = arith.addf %7, %9 : vector<8x32xf32>
    %11 = arith.negf %10 : vector<8x32xf32>
    %12 = math.exp %11 : vector<8x32xf32>
    %cst_8 = arith.constant 1.000000e+00 : f32
    %13 = vector.broadcast %cst_8 : f32 to vector<8x32xf32>
    %14 = arith.addf %13, %12 : vector<8x32xf32>
    %15 = arith.divf %13, %14 : vector<8x32xf32>
    %16 = vector.extract_strided_slice %0 {offsets = [0, 0], sizes = [8, 32], strides = [1, 1]} : vector<8x64xf32> to vector<8x32xf32>
    %17 = vector.extract_strided_slice %0 {offsets = [0, 32], sizes = [8, 32], strides = [1, 1]} : vector<8x64xf32> to vector<8x32xf32>
    %18 = arith.subf %16, %17 : vector<8x32xf32>
    %19 = arith.mulf %15, %18 : vector<8x32xf32>
    %20 = arith.addf %17, %19 : vector<8x32xf32>
    %c0_9 = arith.constant 0 : index
    %c0_10 = arith.constant 0 : index
    %21 = vector.load %arg5[%c0_9, %c0_10] : memref<8x32xf32, #tpu.memory_space<vmem>>, vector<8x32xf32>
    tpu.vector_store %arg5[%c0_9, %c0_10], %20 {strides = array<i32>} : memref<8x32xf32, #tpu.memory_space<vmem>>, vector<8x32xf32>,
    return
  }
  func.func @transform_0(%arg0: i32) -> (i32, i32) {
    %c0_i32 = arith.constant 0 : i32
    %c0_i32_0 = arith.constant 0 : i32
    return %arg0, %c0_i32 : i32, i32
  }
  func.func @transform_1(%arg0: i32) -> (i32, i32) {
    %c0_i32 = arith.constant 0 : i32
    %c0_i32_0 = arith.constant 0 : i32
    return %arg0, %c0_i32 : i32, i32
  }
  func.func @transform_2(%arg0: i32) -> (i32, i32) {
    %c0_i32 = arith.constant 0 : i32
    %c0_i32_0 = arith.constant 0 : i32
    %c0_i32_1 = arith.constant 0 : i32
    return %c0_i32, %c0_i32_0 : i32, i32
  }
  func.func @transform_3(%arg0: i32) -> (i32, i32) {
    %c0_i32 = arith.constant 0 : i32
    %c0_i32_0 = arith.constant 0 : i32
    %c0_i32_1 = arith.constant 0 : i32
    return %c0_i32, %c0_i32_0 : i32, i32
  }
  func.func @transform_4(%arg0: i32) -> (i32, i32) {
    %c0_i32 = arith.constant 0 : i32
    %c0_i32_0 = arith.constant 0 : i32
    return %arg0, %c0_i32 : i32, i32
  }
}

</mosaic_0001>

<llo_original>
// kernel: tpu_custom_call.1
$region0: #{tpu_custom_call.1}
  #allocation0 [shape = 'u32[]', space=smem, size = 0x4, offset = 0x4, fixed_abs, tag = 'smem constant byte address 0x4 - core index']
  #allocation1 [shape = 'u32[72,128]{1,0:T(1,128)}', space=vmem, size = 0x9000, scoped, tag = 'internal scratch']
  %s0 = inlined_call_operand.hbm [shape: f32[8,64], index: 0, kind: input, shape index: {}]
  %s1 = inlined_call_operand.hbm [shape: f32[8,8], index: 1, kind: input, shape index: {}]
  %s2 = inlined_call_operand.hbm [shape: f32[32,72], index: 2, kind: input, shape index: {}]
  %s3 = inlined_call_operand.vmem [shape: f32[1,32], index: 3, kind: input, shape index: {}]
  %s4 = inlined_call_operand.hbm [shape: f32[8,32], index: 4, kind: output, shape index: {}]
  %s5 = sld [smem:[#allocation0]]
  $region38: #{tpu_custom_call.1} parent=0
    _
  %s7 = ssub.s32 1, %s5
  %s8 = scalar_select 0, %s7, %s5
  $region1: #{tpu_custom_call.1} parent=0
    #allocation2 [shape = 'u8[4096]{0}', space=vmem, size = 0x1000, scoped, tag = 'input window, operand 0, single buffered']
    #allocation3 [shape = 's32[1]{0}', space=sflag, size = 0x4, scoped, tag = 'scoped memory for tpu_custom_call.1']
    #allocation4 [shape = 's32[1]{0}', space=sflag, size = 0x4, scoped, tag = 'scoped memory for tpu_custom_call.1']
    #allocation5 [shape = 'u8[4096]{0}', space=vmem, size = 0x1000, scoped, tag = 'input window, operand 1, single buffered']
    #allocation6 [shape = 's32[1]{0}', space=sflag, size = 0x4, scoped, tag = 'scoped memory for tpu_custom_call.1']
    #allocation7 [shape = 'u8[16384]{0}', space=vmem, size = 0x4000, scoped, tag = 'input window, operand 2, single buffered']
    #allocation8 [shape = 'u8[4096]{0}', space=vmem, size = 0x1000, scoped, tag = 'output window, operand 0, single buffered']
    %9 = vsyncpa [#allocation3], 0
    %10 = vsyncpa [#allocation6], 0
    %11 = vsyncpa [#allocation4], 0
    // Predicated region
    $region2: #{tpu_custom_call.1} parent=1 // pred_check
      _
    $region3: #{tpu_custom_call.1} parent=1 // pred_check_branch
      %13 = sbr.rel (0) target = $region5
    $region4: #{tpu_custom_call.1} parent=1 // pred_region
      %15 = vsyncadd [#allocation3], 0
      %s17 = sshll.u32 %s0, 4
      %s18 = int_to_ptr.hbm [resolvable:$true] %s17
      %s19 = sshll.u32 [#allocation2], 4
      %s20 = int_to_ptr.vmem [resolvable:$true] %s19
      %22 = dma.hbm_to_vmem [thread:$0]  %s18, 128, %s20, [#allocation3]
    $region5: #{tpu_custom_call.1} parent=1 // pred_fallthru
      _
    // Predicated region
    $region6: #{tpu_custom_call.1} parent=1 // pred_check
      _
    $region7: #{tpu_custom_call.1} parent=1 // pred_check_branch
      %24 = sbr.rel (0) target = $region9
    $region8: #{tpu_custom_call.1} parent=1 // pred_region
      %26 = vsyncadd [#allocation6], 0
      %s28 = sshll.u32 %s1, 4
      %s29 = int_to_ptr.hbm [resolvable:$true] %s28
      %s30 = sshll.u32 [#allocation5], 4
      %s31 = int_to_ptr.vmem [resolvable:$true] %s30
      %33 = dma.hbm_to_vmem [thread:$0]  %s29, 128, %s31, [#allocation6]
    $region9: #{tpu_custom_call.1} parent=1 // pred_fallthru
      _
    // Predicated region
    $region10: #{tpu_custom_call.1} parent=1 // pred_check
      _
    $region11: #{tpu_custom_call.1} parent=1 // pred_check_branch
      %35 = sbr.rel (0) target = $region13
    $region12: #{tpu_custom_call.1} parent=1 // pred_region
      %37 = vsyncadd [#allocation6], 0
      %s38 = sshll.u32 %s2, 4
      %s39 = int_to_ptr.hbm [resolvable:$true] %s38
      %s40 = sshll.u32 [#allocation7], 4
      %s41 = int_to_ptr.vmem [resolvable:$true] %s40
      %46 = dma.hbm_to_vmem [thread:$0]  %s39, 512, %s41, [#allocation6], 128, 128, 8
    $region13: #{tpu_custom_call.1} parent=1 // pred_fallthru
      _
    // Predicated region
    $region14: #{tpu_custom_call.1} parent=1 // pred_check
      _
    $region15: #{tpu_custom_call.1} parent=1 // pred_check_branch
      %48 = sbr.rel (0) target = $region17
    $region16: #{tpu_custom_call.1} parent=1 // pred_region
      _
    $region17: #{tpu_custom_call.1} parent=1 // pred_fallthru
      _
    // Predicated region
    $region18: #{tpu_custom_call.1} parent=1 // pred_check
      _
    $region19: #{tpu_custom_call.1} parent=1 // pred_check_branch
      %50 = sbr.rel (0) target = $region21
    $region20: #{tpu_custom_call.1} parent=1 // pred_region
      %52 = dma.done [#allocation3], 128
    $region21: #{tpu_custom_call.1} parent=1 // pred_fallthru
      _
    // Predicated region
    $region22: #{tpu_custom_call.1} parent=1 // pred_check
      _
    $region23: #{tpu_custom_call.1} parent=1 // pred_check_branch
      %54 = sbr.rel (0) target = $region25
    $region24: #{tpu_custom_call.1} parent=1 // pred_region
      %56 = dma.done [#allocation6], 128
    $region25: #{tpu_custom_call.1} parent=1 // pred_fallthru
      _
    // Predicated region
    $region26: #{tpu_custom_call.1} parent=1 // pred_check
      _
    $region27: #{tpu_custom_call.1} parent=1 // pred_check_branch
      %58 = sbr.rel (0) target = $region29
    $region28: #{tpu_custom_call.1} parent=1 // pred_region
      %60 = dma.done [#allocation6], 512
    $region29: #{tpu_custom_call.1} parent=1 // pred_fallthru
      _
    %v61 = vld [vmem:[#allocation2] sm:$0xff]
    %v62 = vld [vmem:[#allocation5] sm:$0xff]
    %v63 = vld [vmem:[#allocation7] sm:$0xff]
    %v64 = vld [vmem:[#allocation7 + $0x8] sm:$0xff]
    %v65 = vld [vmem:[#allocation7 + $0x10] sm:$0xff]
    %v66 = vld [vmem:[#allocation7 + $0x18] sm:$0xff]
    %71 = vrot.lane.b32.xlu0 %v63, 64
    %v72 = vpop.permute.xlu0 %71
    %73 = vrot.lane.b32.xlu0 %v64, 64
    %v74 = vpop.permute.xlu0 %73
    %75 = vrot.lane.b32.xlu0 %v65, 64
    %v76 = vpop.permute.xlu0 %75
    %77 = vrot.lane.b32.xlu0 %v66, 64
    %v78 = vpop.permute.xlu0 %77
    %vm79 = vcmask 64512
    %v81 = vsel %vm79, %v62, 0
    %v83 = vsel %vm79, %v72, 0
    %v85 = vsel %vm79, %v74, 0
    %v87 = vsel %vm79, %v76, 0
    %v89 = vsel %vm79, %v78, 0
    %91 = vmatpush.xpose.msra.mxu0 0.0
    %92 = vmatpush.xpose.msra.mxu0 0.0
    %93 = vmatpush.xpose.msra.mxu0 0.0
    %94 = vmatpush.xpose.msra.mxu0 0.0
    %95 = vmatpush.xpose.msra.mxu0 0.0
    %96 = vmatpush.xpose.msra.mxu0 0.0
    %97 = vmatpush.xpose.msra.mxu0 0.0
    %98 = vmatpush.xpose.msra.mxu0 0.0
    %99 = vmatpush.xpose.msra.mxu0 0.0
    %100 = vmatpush.xpose.msra.mxu0 0.0
    %101 = vmatpush.xpose.msra.mxu0 0.0
    %102 = vmatpush.xpose.msra.mxu0 0.0
    %103 = vmatpush.xpose.msra.mxu0 %v89
    %104 = vmatpush.xpose.msra.mxu0 %v87
    %105 = vmatpush.xpose.msra.mxu0 %v85
    %106 = vmatpush.xpose.msra.mxu0 %v83
    %107 = vmatmul.f32.gmra.mxu0 %v81
    %v108 = vpop.f32.mrf.mxu0
    %v109 = vadd.f32 0.0, %v108
    %110 = vdwg.mxu0
    %vm111 = vcmask 523264
    %v113 = vsel %vm111, %v61, 0
    %v115 = vsel %vm111, %v63, 0
    %v117 = vsel %vm111, %v64, 0
    %v119 = vsel %vm111, %v65, 0
    %v121 = vsel %vm111, %v66, 0
    %123 = vmatpush.xpose.msra.mxu0 0.0
    %124 = vmatpush.xpose.msra.mxu0 0.0
    %125 = vmatpush.xpose.msra.mxu0 0.0
    %126 = vmatpush.xpose.msra.mxu0 0.0
    %127 = vmatpush.xpose.msra.mxu0 0.0
    %128 = vmatpush.xpose.msra.mxu0 0.0
    %129 = vmatpush.xpose.msra.mxu0 0.0
    %130 = vmatpush.xpose.msra.mxu0 0.0
    %131 = vmatpush.xpose.msra.mxu0 0.0
    %132 = vmatpush.xpose.msra.mxu0 0.0
    %133 = vmatpush.xpose.msra.mxu0 0.0
    %134 = vmatpush.xpose.msra.mxu0 0.0
    %135 = vmatpush.xpose.msra.mxu0 %v121
    %136 = vmatpush.xpose.msra.mxu0 %v119
    %137 = vmatpush.xpose.msra.mxu0 %v117
    %138 = vmatpush.xpose.msra.mxu0 %v115
    %139 = vmatmul.f32.gmra.mxu0 %v113
    %v140 = vpop.f32.mrf.mxu0
    %v141 = vadd.f32 %v109, %v140
    %142 = vdwg.mxu0
    %v143 = vld [vmem:[%s3] sm:$0x1]
    %v145 = vperm.slane %v143, 0
    %v147 = vadd.f32 %v141, %v145
    %v148 = vxor.u32 %v147, 2147483648
    %v149 = vmul.f32 %v148, 1.442695
    %v150 = vpow.pop %v149
    %v151 = vadd.f32 %v150, 1.0
    %v152 = vrcp.pop %v151
    %v153 = vmul.f32 %v151, %v152
    %v154 = vsub.f32 1.0, %v153
    %v155 = vmul.f32 %v152, %v154
    %v156 = vadd.f32 %v152, %v155
    %vm157 = vweird.f32 %v151
    %vm158 = vweird.f32 %v152
    %vm159 = vmor %vm157, %vm158
    %v160 = vsel %vm159, %v152, %v156
    %v161 = vand.u32 2147483647, %v151
    %vm162 = vcmp.eq.f32.partialorder %v161, 8.507059e+37
    %v163 = vand.u32 %v151, 2147483648
    %v164 = vor.u32 1.1754944e-38, %v163
    %v165 = vsel %vm162, %v164, %v160
    %v166 = vmul.f32 1.0, %v165
    %167 = vrot.lane.b32.xlu0 %v61, 96
    %v168 = vpop.permute.xlu0 %167
    %v170 = vsub.f32 %v61, %v168
    %v171 = vmul.f32 %v166, %v170
    %173 = vrot.lane.b32.xlu0 %v171, 32
    %v174 = vpop.permute.xlu0 %173
    %v176 = vadd.f32 %v61, %v174
    %178 = vrot.lane.b32.xlu0 %v176, 96
    %v179 = vpop.permute.xlu0 %178
    %vm181 = vcmask 261120
    %182 = vst.msk [vmem:[#allocation8] sm:$0xff] %vm181, %v179
    // Predicated region
    $region30: #{tpu_custom_call.1} parent=1 // pred_check
      _
    $region31: #{tpu_custom_call.1} parent=1 // pred_check_branch
      %184 = sbr.rel (0) target = $region33
    $region32: #{tpu_custom_call.1} parent=1 // pred_region
      %186 = vsyncadd [#allocation4], 0
      %s188 = sshll.u32 [#allocation8], 4
      %s189 = int_to_ptr.vmem [resolvable:$true] %s188
      %s190 = sshll.u32 %s4, 4
      %s191 = int_to_ptr.hbm [resolvable:$true] %s190
      %193 = dma.vmem_to_hbm [thread:$0]  %s189, 128, %s191, [#allocation4]
    $region33: #{tpu_custom_call.1} parent=1 // pred_fallthru
      _
    // Predicated region
    $region34: #{tpu_custom_call.1} parent=1 // pred_check
      _
    $region35: #{tpu_custom_call.1} parent=1 // pred_check_branch
      %195 = sbr.rel (0) target = $region37
    $region36: #{tpu_custom_call.1} parent=1 // pred_region
      %197 = dma.done [#allocation4], 128
    $region37: #{tpu_custom_call.1} parent=1 // pred_fallthru
      _
    %198 = vsyncpa [#allocation3], 1
    %199 = vsyncpa [#allocation6], 1
    %200 = vsyncpa [#allocation4], 1

</llo_original>
